<compile_context>
chip_gen: v7x
topology: tpu7x:2x2x1
jax: 0.10.0
libtpu: 0.0.40
codegen_flags: <defaults>
</compile_context>

<pallas_src>
import jax
import jax.numpy as jnp
from jax.experimental import pallas as pl
from jax.experimental.pallas import tpu as pltpu

_LANE = 128             # lane width of a vreg
_ROW_ALIGN = 32         # sublane alignment valid for f32/bf16/int8 packing
_MAX_BLOCK_ROWS = 1024  # 1024 x 128 f32 = 512 KiB per block


def _identity_kernel(x_ref, o_ref):
    # The only "compute" in no_bn.forward is returning x.
    o_ref[...] = x_ref[...]


@jax.jit
def no_bn_forward(x):
    """Pallas implementation of no_bn.forward: returns x unchanged."""
    orig_shape = x.shape
    total = x.size

    if total == 0:
        return x

    flat = x.reshape(-1)

    # Lane-dense 2D view: last dim = 128 lanes; rows rounded up so the grid
    # tiles evenly with full (block_rows, 128) blocks.
    rows = pl.cdiv(total, _LANE)
    rows = ((rows + _ROW_ALIGN - 1) // _ROW_ALIGN) * _ROW_ALIGN
    block_rows = min(_MAX_BLOCK_ROWS, rows)
    rows = ((rows + block_rows - 1) // block_rows) * block_rows
    padded_total = rows * _LANE
    if padded_total != total:
        flat = jnp.pad(flat, (0, padded_total - total))
    x2d = flat.reshape(rows, _LANE)

    out2d = pl.pallas_call(
        _identity_kernel,
        out_shape=jax.ShapeDtypeStruct((rows, _LANE), x2d.dtype),
        grid=(rows // block_rows,),
        in_specs=[pl.BlockSpec((block_rows, _LANE), lambda i: (i, 0))],
        out_specs=pl.BlockSpec((block_rows, _LANE), lambda i: (i, 0)),
        # Output aliases the input slab: no extra HBM output allocation.
        input_output_aliases={0: 0},
        compiler_params=pltpu.CompilerParams(
            dimension_semantics=("parallel",),
        ),
    )(x2d)

    if padded_total != total:
        return out2d.reshape(-1)[:total].reshape(orig_shape)
    return out2d.reshape(orig_shape)


if __name__ == "__main__":
    key = jax.random.PRNGKey(0)
    x = jax.random.normal(key, (2, 4, 16, 16), dtype=jnp.float32)

    y = no_bn_forward(x)
    jax.block_until_ready(y)

    assert y.shape == x.shape
    assert y.dtype == x.dtype
    assert bool(jnp.all(y == x))

    print("KERNEL_OK")
</pallas_src>

<mosaic_0001>
module attributes {stable_mosaic.version = 11 : i64} {
  func.func @_identity_kernel(%arg0: i32, %arg1: memref<32x128xf32, #tpu.memory_space<vmem>>, %arg2: memref<32x128xf32, #tpu.memory_space<vmem>>) attributes {dimension_semantics = [#tpu.dimension_semantics<parallel>], iteration_bounds = array<i64: 1>, scalar_prefetch = 0 : i64, scratch_operands = 0 : i64, tpu.core_type = #tpu.core_type<tc>, window_params = [{transform_indices = @transform_0, window_bounds = array<i64: 32, 128>}, {transform_indices = @transform_1, window_bounds = array<i64: 32, 128>}]} {
    %c0 = arith.constant 0 : index
    %c0_0 = arith.constant 0 : index
    %0 = vector.load %arg1[%c0, %c0_0] : memref<32x128xf32, #tpu.memory_space<vmem>>, vector<32x128xf32>
    %c0_1 = arith.constant 0 : index
    %c0_2 = arith.constant 0 : index
    %1 = vector.load %arg2[%c0_1, %c0_2] : memref<32x128xf32, #tpu.memory_space<vmem>>, vector<32x128xf32>
    tpu.vector_store %arg2[%c0_1, %c0_2], %0 {strides = array<i32>} : memref<32x128xf32, #tpu.memory_space<vmem>>, vector<32x128xf32>,
    return
  }
  func.func @transform_0(%arg0: i32) -> (i32, i32) {
    %c0_i32 = arith.constant 0 : i32
    %c0_i32_0 = arith.constant 0 : i32
    return %arg0, %c0_i32 : i32, i32
  }
  func.func @transform_1(%arg0: i32) -> (i32, i32) {
    %c0_i32 = arith.constant 0 : i32
    %c0_i32_0 = arith.constant 0 : i32
    return %arg0, %c0_i32 : i32, i32
  }
}

</mosaic_0001>

<llo_original>
// kernel: no_bn_forward.1
$region0: #{no_bn_forward.1}
  #allocation0 [shape = 'u32[]', space=smem, size = 0x4, offset = 0x4, fixed_abs, tag = 'smem constant byte address 0x4 - core index']
  #allocation1 [shape = 'u32[144,128]{1,0:T(1,128)}', space=vmem, size = 0x12000, scoped, tag = 'internal scratch']
  %s0 = inlined_call_operand.vmem [shape: f32[32,128], index: 0, kind: input, shape index: {}, may-alias: {0,1}]
  %s1 = inlined_call_operand.vmem [shape: f32[32,128], index: 1, kind: output, shape index: {}, may-alias: {0,1}]
  %s2 = sld [smem:[#allocation0]]
  $region14: #{no_bn_forward.1} parent=0
    _
  %s4 = ssub.s32 1, %s2
  %s5 = scalar_select 0, %s4, %s2
  // Predicated region
  $region2: #{no_bn_forward.1} parent=0 // pred_check
    _
  $region3: #{no_bn_forward.1} parent=0 // pred_check_branch
    %7 = sbr.rel (0) target = $region5
  $region4: #{no_bn_forward.1} parent=0 // pred_region
    _
  $region5: #{no_bn_forward.1} parent=0 // pred_fallthru
    _
  %v8 = vld [vmem:[%s0] sm:$0xff]
  %v9 = vld [vmem:[%s0 + $0x8] sm:$0xff]
  %v10 = vld [vmem:[%s0 + $0x10] sm:$0xff]
  %v11 = vld [vmem:[%s0 + $0x18] sm:$0xff]
  %12 = vst [vmem:[%s1] sm:$0xff] %v8
  %13 = vst [vmem:[%s1 + $0x8] sm:$0xff] %v9
  %14 = vst [vmem:[%s1 + $0x10] sm:$0xff] %v10
  %15 = vst [vmem:[%s1 + $0x18] sm:$0xff] %v11
  // Predicated region
  $region6: #{no_bn_forward.1} parent=0 // pred_check
    _
  $region7: #{no_bn_forward.1} parent=0 // pred_check_branch
    %17 = sbr.rel (0) target = $region9
  $region8: #{no_bn_forward.1} parent=0 // pred_region
    _
  $region9: #{no_bn_forward.1} parent=0 // pred_fallthru
    _
  // Predicated region
  $region10: #{no_bn_forward.1} parent=0 // pred_check
    _
  $region11: #{no_bn_forward.1} parent=0 // pred_check_branch
    %19 = sbr.rel (0) target = $region13
  $region12: #{no_bn_forward.1} parent=0 // pred_region
    _
  $region13: #{no_bn_forward.1} parent=0 // pred_fallthru
    _

</llo_original>
